<compile_context>
chip_gen: v6e
topology: v6e:2x2x1
jax: 0.10.0
libtpu: 0.0.40
codegen_flags: <defaults>
</compile_context>

<pallas_src>
import functools

import jax
import jax.numpy as jnp
from jax.experimental import pallas as pl
from jax.experimental.pallas import tpu as pltpu


# ----------------------------------------------------------------------------
# Kernel
# ----------------------------------------------------------------------------
def _ffn_kernel(x_ref, w13_ref, w2_ref, o_ref, acc_ref, *, th):
    # x_ref  : [tm, dim]        token tile (resident across the hidden axis)
    # w13_ref: [dim, 2*th]      fused [W1_k | W3_k] slab, streamed along hidden
    # w2_ref : [th, dim]        W2 slab, streamed along hidden
    # o_ref  : [tm, dim]        output tile (leading core-split dim squeezed)
    # acc_ref: [tm, dim] f32    accumulator across the hidden axis
    k = pl.program_id(2)

    @pl.when(k == 0)
    def _init():
        acc_ref[...] = jnp.zeros_like(acc_ref)

    x = x_ref[...]
    # One MXU pass produces both h1 and h3 (static split of the fused slab).
    h13 = jnp.dot(x, w13_ref[...], preferred_element_type=jnp.float32)
    h1 = h13[:, :th]
    h3 = h13[:, th:]

    # SiLU(h1) * h3 in f32: exp + approximate reciprocal go to the EUP slot,
    # leaving only cheap VPU multiplies on the VALU.
    sig = pl.reciprocal(1.0 + jnp.exp(-h1), approx=True)
    gated = (h1 * sig) * h3

    acc_ref[...] += jnp.dot(gated.astype(w2_ref.dtype), w2_ref[...],
                            preferred_element_type=jnp.float32)

    @pl.when(k == pl.num_programs(2) - 1)
    def _finalize():
        o_ref[...] = acc_ref[...].astype(o_ref.dtype)


# ----------------------------------------------------------------------------
# Generation-aware tile selection helpers
# ----------------------------------------------------------------------------
def _tpu_params():
    """(vmem_capacity_bytes, mxu_tile_multiple, has_two_tensorcores)."""
    kind = ""
    try:
        kind = (jax.devices()[0].device_kind or "").lower()
    except Exception:  # pragma: no cover - defensive
        pass
    vmem = None
    try:
        info = pltpu.get_tpu_info()
        vmem = int(getattr(info, "vmem_capacity_bytes", 0)) or None
    except Exception:  # pragma: no cover - defensive
        vmem = None
    if vmem is None:
        # v3/v4/v5e/v6e: 128 MiB per core; v7x: 64 MiB. Conservative default.
        if any(g in kind for g in ("v3", "v4", "v5", "v6")):
            vmem = 128 * 1024 * 1024
        else:
            vmem = 64 * 1024 * 1024
    # MXU tile multiple: 128 through v5e, 256 on v6e / v7x.
    mxu = 128 if any(g in kind for g in ("v2", "v3", "v4", "v5")) else 256
    # Chips with two TensorCores sharing HBM (megacore v4/v5p, v7x): worth
    # splitting the decode hidden reduction across cores.
    two_cores = any(g in kind for g in ("v4", "v5p", "7"))
    return vmem, mxu, two_cores


def _ffn_vmem_bytes(tm, th, dim, w_itemsize, out_itemsize):
    """Rough VMEM footprint: double-buffered tiles + f32 intermediates."""
    x_b = 2 * tm * dim * w_itemsize           # x tile, double-buffered
    w13_b = 2 * dim * (2 * th) * w_itemsize   # fused W1|W3 slab, double-buffered
    w2_b = 2 * th * dim * w_itemsize          # W2 slab, double-buffered
    out_b = 2 * tm * dim * out_itemsize       # output tile, double-buffered
    acc_b = tm * dim * 4                      # f32 accumulator scratch
    mid_b = 5 * tm * th * 4                   # h13 / sig / gated f32 temporaries
    return x_b + w13_b + w2_b + out_b + acc_b + mid_b


def _round_to_divisor(hidden, th):
    """Largest 128-multiple <= th that divides hidden, else hidden itself."""
    if th >= hidden:
        return hidden
    t = (th // 128) * 128
    while t >= 128 and hidden % t != 0:
        t -= 128
    return t if t >= 128 else hidden


def _pick_hidden_tile(hidden, tm, dim, w_itemsize, out_itemsize, vmem_budget):
    """Largest hidden slab (128-multiple divisor of hidden) that fits VMEM."""
    cands = []
    t = (hidden // 128) * 128
    while t >= 128:
        if hidden % t == 0:
            cands.append(t)
        t -= 128
    if not cands:
        return hidden  # tiny / non-128-aligned hidden: take the whole thing
    for t in cands:
        if _ffn_vmem_bytes(tm, t, dim, w_itemsize, out_itemsize) <= vmem_budget:
            return t
    return cands[-1]


# ----------------------------------------------------------------------------
# Wrapper
# ----------------------------------------------------------------------------
def feed_forward(x, w1, w3, w2, *, tm=None, th=None, vmem_limit_bytes=None,
                 split_cores=None):
    """SwiGLU FFN: x[..., dim] -> [..., dim].

    tm / th / vmem_limit_bytes default to generation-aware values:
      v6e : tm=512, th up to 2048-4096, vmem limit ~108 MiB
      v7x : tm=512 (prefill) / full-M (decode), th 512-1024, limit ~54 MiB,
            decode hidden reduction split across the 2 TensorCores
      v5e : tm=256, th >= 512 so weight-slab DMAs stay long and contiguous
    """
    dim = x.shape[-1]
    hidden = w1.shape[-1]
    orig_shape = x.shape
    x2d = x.reshape(-1, dim)
    m = x2d.shape[0]

    vmem_cap, mxu, two_cores = _tpu_params()
    if vmem_limit_bytes is None:
        vmem_limit_bytes = max(32 * 1024 * 1024,
                               min(int(vmem_cap * 0.85),
                                   vmem_cap - 8 * 1024 * 1024))
    vmem_limit_bytes = int(vmem_limit_bytes)
    budget = int(vmem_limit_bytes * 0.9)

    w_itemsize = jnp.dtype(w1.dtype).itemsize

    # ---- token tile (rounded to the MXU multiple for prefill) ----
    if tm is None:
        tm_target = 512 if mxu == 256 else 256
    else:
        tm_target = max(8, (tm // 8) * 8)
    if m <= tm_target:
        tm_eff = m                          # decode / short prefill: one block
    else:
        tm_eff = (max(mxu, (tm_target // mxu) * mxu)
                  if tm is None else tm_target)
    # Safety: shrink tm if even the narrowest hidden slab cannot fit VMEM.
    while tm_eff > mxu and _ffn_vmem_bytes(tm_eff, 128, dim, w_itemsize, 4) > budget:
        tm_eff = max(mxu, tm_eff // 2)
    m_tiles = pl.cdiv(m, tm_eff)

    # ---- hidden slab ----
    if th is None:
        th_eff = _pick_hidden_tile(hidden, tm_eff, dim, w_itemsize, 4, budget)
    else:
        th_eff = _round_to_divisor(hidden, th)
    n_k = hidden // th_eff

    # ---- optional 2-TensorCore split of the hidden reduction (decode) ----
    if split_cores is None:
        n_split = 2 if (two_cores and m_tiles == 1
                        and n_k >= 2 and n_k % 2 == 0) else 1
    else:
        n_split = split_cores if (split_cores >= 1
                                  and n_k % split_cores == 0) else 1
    k_per_core = n_k // n_split
    # Partial results per core are kept in f32 and summed exactly outside.
    out_dtype = jnp.float32 if n_split > 1 else x.dtype

    # ---- fuse W1|W3 per hidden tile: tile j of [dim, 2*hidden] = [W1_j | W3_j]
    w13 = jnp.concatenate(
        [w1.reshape(dim, n_k, th_eff), w3.reshape(dim, n_k, th_eff)],
        axis=-1).reshape(dim, 2 * hidden)

    grid = (n_split, m_tiles, k_per_core)
    kernel = functools.partial(_ffn_kernel, th=th_eff)

    out = pl.pallas_call(
        kernel,
        out_shape=jax.ShapeDtypeStruct((n_split, m, dim), out_dtype),
        grid_spec=pltpu.PrefetchScalarGridSpec(
            num_scalar_prefetch=0,
            grid=grid,
            in_specs=[
                # x tile: resident across the hidden (reduction) axis.
                pl.BlockSpec((tm_eff, dim),
                             lambda c, i, k: (i, 0)),
                # Fused W1|W3 slab: streamed along hidden; core c owns tiles
                # [c*k_per_core, (c+1)*k_per_core).
                pl.BlockSpec((dim, 2 * th_eff),
                             lambda c, i, k, kpc=k_per_core: (0, c * kpc + k)),
                # W2 slab: streamed along its hidden (reduction) axis.
                pl.BlockSpec((th_eff, dim),
                             lambda c, i, k, kpc=k_per_core: (c * kpc + k, 0)),
            ],
            out_specs=pl.BlockSpec((None, tm_eff, dim),
                                   lambda c, i, k: (c, i, 0)),
            scratch_shapes=[pltpu.VMEM((tm_eff, dim), jnp.float32)],
        ),
        compiler_params=pltpu.CompilerParams(
            dimension_semantics=("parallel", "parallel", "arbitrary"),
            vmem_limit_bytes=vmem_limit_bytes,
        ),
    )(x2d, w13, w2)

    if n_split > 1:
        out2d = out.sum(axis=0).astype(x.dtype)
    else:
        out2d = out.reshape(m, dim)
    return out2d.reshape(orig_shape)


def feed_forward_ref(x, w1, w3, w2):
    """Pure-JAX f32 reference on the same (possibly bf16-rounded) inputs."""
    xf = x.astype(jnp.float32)
    h1 = xf @ w1.astype(jnp.float32)
    h3 = xf @ w3.astype(jnp.float32)
    return ((h1 * jax.nn.sigmoid(h1)) * h3) @ w2.astype(jnp.float32)


# ----------------------------------------------------------------------------
# Self-test
# ----------------------------------------------------------------------------
def _make_inputs(key, batch, seq, dim, hidden):
    kx, k1, k2, k3 = jax.random.split(key, 4)
    x = jax.random.normal(kx, (batch, seq, dim), dtype=jnp.float32)
    w1 = jax.random.normal(k1, (dim, hidden), dtype=jnp.float32) * 0.05
    w3 = jax.random.normal(k3, (dim, hidden), dtype=jnp.float32) * 0.05
    w2 = jax.random.normal(k2, (hidden, dim), dtype=jnp.float32) * 0.05
    # Matmul inputs in bf16 (module DEFAULT_FLOAT), f32 accumulation in-kernel.
    return (x.astype(jnp.bfloat16), w1.astype(jnp.bfloat16),
            w3.astype(jnp.bfloat16), w2.astype(jnp.bfloat16))


def _check(name, x, w1, w3, w2, **kw):
    y = jax.block_until_ready(feed_forward(x, w1, w3, w2, **kw))
    y_ref = feed_forward_ref(x, w1, w3, w2)
    assert y.shape == x.shape, name
    assert y.dtype == x.dtype, name
    # bf16 output + bf16-cast gate before W2 + approx reciprocal -> relaxed tol.
    assert jnp.allclose(y.astype(jnp.float32), y_ref, atol=2e-2, rtol=6e-2), \
        f"{name}: mismatch vs reference"


if __name__ == "__main__":
    key = jax.random.PRNGKey(0)
    k1, k2, k3 = jax.random.split(key, 3)

    # 1) Small shapes consistent with the module: tokens=batch*seq=8,
    #    dim=32, hidden_dim=64 -- auto tile selection (single hidden tile).
    x, w1, w3, w2 = _make_inputs(k1, batch=2, seq=4, dim=32, hidden=64)
    _check("small", x, w1, w3, w2)

    # 2) Prefill-like path: multiple token tiles (ragged last block) and a
    #    multi-step hidden reduction (grid = (1, 2, 4)).
    x, w1, w3, w2 = _make_inputs(k2, batch=2, seq=72, dim=128, hidden=512)
    _check("prefill", x, w1, w3, w2, tm=128, th=128)

    # 3) Decode path with the hidden reduction split across a leading
    #    "parallel" core axis (grid = (2, 1, 2); exact f32 partial sum).
    x, w1, w3, w2 = _make_inputs(k3, batch=2, seq=1, dim=128, hidden=512)
    _check("decode_split", x, w1, w3, w2, th=128, split_cores=2)

    print("KERNEL_OK")
</pallas_src>

<mosaic_0001>
module attributes {stable_mosaic.version = 11 : i64} {
  func.func @_ffn_kernel(%arg0: i32, %arg1: i32, %arg2: i32, %arg3: memref<8x32xbf16, #tpu.memory_space<vmem>>, %arg4: memref<32x128xbf16, #tpu.memory_space<vmem>>, %arg5: memref<64x32xbf16, #tpu.memory_space<vmem>>, %arg6: memref<1x8x32xbf16, #tpu.memory_space<vmem>>, %arg7: memref<8x32xf32, #tpu.memory_space<vmem>>) attributes {dimension_semantics = [#tpu.dimension_semantics<parallel>, #tpu.dimension_semantics<parallel>, #tpu.dimension_semantics<arbitrary>], iteration_bounds = array<i64: 1, 1, 1>, scalar_prefetch = 0 : i64, scratch_operands = 1 : i64, tpu.core_type = #tpu.core_type<tc>, window_params = [{transform_indices = @transform_0, window_bounds = array<i64: 8, 32>}, {transform_indices = @transform_1, window_bounds = array<i64: 32, 128>}, {transform_indices = @transform_2, window_bounds = array<i64: 64, 32>}, {transform_indices = @transform_3, window_bounds = array<i64: 1, 8, 32>}]} {
    %c0_i32 = arith.constant 0 : i32
    %0 = arith.cmpi eq, %arg2, %c0_i32 : i32
    %1 = arith.extui %0 : i1 to i32
    %c0_i32_0 = arith.constant 0 : i32
    %2 = arith.cmpi ne, %1, %c0_i32_0 : i32
    scf.if %2 {
      %cst_15 = arith.constant 0.000000e+00 : f32
      %25 = vector.broadcast %cst_15 : f32 to vector<8x32xf32>
      %c0_16 = arith.constant 0 : index
      %c0_17 = arith.constant 0 : index
      %26 = vector.load %arg7[%c0_16, %c0_17] : memref<8x32xf32, #tpu.memory_space<vmem>>, vector<8x32xf32>
      tpu.vector_store %arg7[%c0_16, %c0_17], %25 {strides = array<i32>} : memref<8x32xf32, #tpu.memory_space<vmem>>, vector<8x32xf32>,
    } else {
    }
    %c0 = arith.constant 0 : index
    %c0_1 = arith.constant 0 : index
    %3 = vector.load %arg3[%c0, %c0_1] : memref<8x32xbf16, #tpu.memory_space<vmem>>, vector<8x32xbf16>
    %c0_2 = arith.constant 0 : index
    %c0_3 = arith.constant 0 : index
    %4 = vector.load %arg4[%c0_2, %c0_3] : memref<32x128xbf16, #tpu.memory_space<vmem>>, vector<32x128xbf16>
    %cst = arith.constant dense<0.000000e+00> : vector<8x128xf32>
    %5 = tpu.matmul %3, %4, %cst {dimension_numbers = #tpu.dot_dimension_numbers<[1], [0], [0], [1], [0, 0, 1, 1], [], []>} : vector<8x32xbf16>, vector<32x128xbf16>, vector<8x128xf32> -> vector<8x128xf32>
    %6 = vector.extract_strided_slice %5 {offsets = [0, 0], sizes = [8, 64], strides = [1, 1]} : vector<8x128xf32> to vector<8x64xf32>
    %7 = vector.extract_strided_slice %5 {offsets = [0, 64], sizes = [8, 64], strides = [1, 1]} : vector<8x128xf32> to vector<8x64xf32>
    %cst_4 = arith.constant 0.000000e+00 : f32
    %8 = vector.broadcast %cst_4 : f32 to vector<8x64xf32>
    %9 = arith.subf %8, %6 : vector<8x64xf32>
    %10 = math.exp %9 : vector<8x64xf32>
    %cst_5 = arith.constant 1.000000e+00 : f32
    %11 = vector.broadcast %cst_5 : f32 to vector<8x64xf32>
    %12 = arith.addf %11, %10 : vector<8x64xf32>
    %13 = tpu.reciprocal %12 {approx = true} : vector<8x64xf32> -> vector<8x64xf32>
    %14 = arith.mulf %6, %13 : vector<8x64xf32>
    %15 = arith.mulf %14, %7 : vector<8x64xf32>
    %c0_6 = arith.constant 0 : index
    %c0_7 = arith.constant 0 : index
    %16 = vector.load %arg7[%c0_6, %c0_7] : memref<8x32xf32, #tpu.memory_space<vmem>>, vector<8x32xf32>
    %17 = arith.truncf %15 : vector<8x64xf32> to vector<8x64xbf16>
    %c0_8 = arith.constant 0 : index
    %c0_9 = arith.constant 0 : index
    %18 = vector.load %arg5[%c0_8, %c0_9] : memref<64x32xbf16, #tpu.memory_space<vmem>>, vector<64x32xbf16>
    %cst_10 = arith.constant dense<0.000000e+00> : vector<8x32xf32>
    %19 = tpu.matmul %17, %18, %cst_10 {dimension_numbers = #tpu.dot_dimension_numbers<[1], [0], [0], [1], [0, 0, 1, 1], [], []>} : vector<8x64xbf16>, vector<64x32xbf16>, vector<8x32xf32> -> vector<8x32xf32>
    %20 = arith.addf %16, %19 : vector<8x32xf32>
    %c0_11 = arith.constant 0 : index
    %c0_12 = arith.constant 0 : index
    %21 = vector.load %arg7[%c0_11, %c0_12] : memref<8x32xf32, #tpu.memory_space<vmem>>, vector<8x32xf32>
    tpu.vector_store %arg7[%c0_11, %c0_12], %20 {strides = array<i32>} : memref<8x32xf32, #tpu.memory_space<vmem>>, vector<8x32xf32>,
    %c0_i32_13 = arith.constant 0 : i32
    %22 = arith.cmpi eq, %arg2, %c0_i32_13 : i32
    %23 = arith.extui %22 : i1 to i32
    %c0_i32_14 = arith.constant 0 : i32
    %24 = arith.cmpi ne, %23, %c0_i32_14 : i32
    scf.if %24 {
      %c0_15 = arith.constant 0 : index
      %c0_16 = arith.constant 0 : index
      %25 = vector.load %arg7[%c0_15, %c0_16] : memref<8x32xf32, #tpu.memory_space<vmem>>, vector<8x32xf32>
      %26 = arith.truncf %25 : vector<8x32xf32> to vector<8x32xbf16>
      %c0_17 = arith.constant 0 : index
      %c0_18 = arith.constant 0 : index
      %c0_19 = arith.constant 0 : index
      %27 = vector.load %arg6[%c0_17, %c0_18, %c0_19] : memref<1x8x32xbf16, #tpu.memory_space<vmem>>, vector<1x8x32xbf16>
      %28 = vector.shape_cast %27 : vector<1x8x32xbf16> to vector<8x32xbf16>
      %29 = vector.shape_cast %26 : vector<8x32xbf16> to vector<1x8x32xbf16>
      tpu.vector_store %arg6[%c0_17, %c0_18, %c0_19], %29 {strides = array<i32>} : memref<1x8x32xbf16, #tpu.memory_space<vmem>>, vector<1x8x32xbf16>,
    } else {
    }
    return
  }
  func.func @transform_0(%arg0: i32, %arg1: i32, %arg2: i32) -> (i32, i32) {
    %c0_i32 = arith.constant 0 : i32
    %c0_i32_0 = arith.constant 0 : i32
    return %arg1, %c0_i32 : i32, i32
  }
  func.func @transform_1(%arg0: i32, %arg1: i32, %arg2: i32) -> (i32, i32) {
    %c1_i32 = arith.constant 1 : i32
    %0 = arith.muli %arg0, %c1_i32 : i32
    %1 = arith.addi %0, %arg2 : i32
    %c0_i32 = arith.constant 0 : i32
    %c0_i32_0 = arith.constant 0 : i32
    return %c0_i32, %1 : i32, i32
  }
  func.func @transform_2(%arg0: i32, %arg1: i32, %arg2: i32) -> (i32, i32) {
    %c1_i32 = arith.constant 1 : i32
    %0 = arith.muli %arg0, %c1_i32 : i32
    %1 = arith.addi %0, %arg2 : i32
    %c0_i32 = arith.constant 0 : i32
    %c0_i32_0 = arith.constant 0 : i32
    return %1, %c0_i32 : i32, i32
  }
  func.func @transform_3(%arg0: i32, %arg1: i32, %arg2: i32) -> (i32, i32, i32) {
    %c0_i32 = arith.constant 0 : i32
    %c0_i32_0 = arith.constant 0 : i32
    return %arg0, %arg1, %c0_i32 : i32, i32, i32
  }
}

</mosaic_0001>

<llo_original>
// kernel: tpu_custom_call.1
$region0: #{tpu_custom_call.1}
  #allocation0 [shape = 'u32[]', space=smem, size = 0x4, offset = 0x4, fixed_abs, tag = 'smem constant byte address 0x4 - core index']
  #allocation1 [shape = 'u32[144,128]{1,0:T(1,128)}', space=vmem, size = 0x12000, scoped, tag = 'internal scratch']
  #allocation2 [shape = 'f32[8,32]{1,0:T(8,128)}', space=vmem, size = 0x1000, scoped, tag = 'scratch operand']
  %s0 = inlined_call_operand.vmem [shape: bf16[8,32], index: 0, kind: input, shape index: {}]
  %s1 = inlined_call_operand.vmem [shape: bf16[32,128], index: 1, kind: input, shape index: {}]
  %s2 = inlined_call_operand.vmem [shape: bf16[64,32], index: 2, kind: input, shape index: {}]
  %s3 = inlined_call_operand.hbm [shape: bf16[1,8,32], index: 3, kind: output, shape index: {}]
  %s4 = sld [smem:[#allocation0]]
  $region30: #{tpu_custom_call.1} parent=0
    _
  %s6 = ssub.s32 1, %s4
  %s7 = scalar_select 0, %s6, %s4
  $region1: #{tpu_custom_call.1} parent=0
    #allocation3 [shape = 'u8[2048]{0}', space=vmem, size = 0x800, scoped, tag = 'output window, operand 0, single buffered']
    #allocation4 [shape = 's32[1]{0}', space=sflag, size = 0x4, scoped, tag = 'scoped memory for tpu_custom_call.1']
    %8 = vsyncpa [#allocation4], 0
    // Predicated region
    $region2: #{tpu_custom_call.1} parent=1 // pred_check
      _
    $region3: #{tpu_custom_call.1} parent=1 // pred_check_branch
      %10 = sbr.rel (0) target = $region5
    $region4: #{tpu_custom_call.1} parent=1 // pred_region
      _
    $region5: #{tpu_custom_call.1} parent=1 // pred_fallthru
      _
    // Predicated region
    $region6: #{tpu_custom_call.1} parent=1 // pred_check
      _
    $region7: #{tpu_custom_call.1} parent=1 // pred_check_branch
      %12 = sbr.rel (0) target = $region9
    $region8: #{tpu_custom_call.1} parent=1 // pred_region
      %s13 = sadd.s32 0, 0
      %p14 = scmp.lt.s32.totalorder %s13, 0
      %s15 = scalar_select %p14, %s13, 0
      %s16 = smul.addr %s15, 4
      %s17 = scalar_lea.vmem %s1, %s16
      %s18 = sadd.s32 0, 0
    $region9: #{tpu_custom_call.1} parent=1 // pred_fallthru
      _
    // Predicated region
    $region10: #{tpu_custom_call.1} parent=1 // pred_check
      _
    $region11: #{tpu_custom_call.1} parent=1 // pred_check_branch
      %20 = sbr.rel (0) target = $region13
    $region12: #{tpu_custom_call.1} parent=1 // pred_region
      %s21 = sadd.s32 0, 0
      %s22 = smul.u32 8, %s21
      %p23 = scmp.lt.s32.totalorder %s22, 7
      %s24 = scalar_select %p23, %s22, 7
      %s25 = smul.addr %s24, 4
      %s26 = scalar_lea.vmem %s2, %s25
      %s27 = sadd.s32 0, 0
      %s28 = smul.u32 8, %s27
    $region13: #{tpu_custom_call.1} parent=1 // pred_fallthru
      _
    %s29 = sadd.s32 0, 0
    %p30 = scmp.lt.s32.totalorder %s29, 0
    %s31 = scalar_select %p30, %s29, 0
    %s32 = smul.addr %s31, 4
    %s33 = scalar_lea.vmem %s1, %s32
    %s34 = sadd.s32 0, 0
    %s35 = smul.u32 8, %s34
    %p36 = scmp.lt.s32.totalorder %s35, 7
    %s37 = scalar_select %p36, %s35, 7
    %s38 = smul.addr %s37, 4
    %s39 = scalar_lea.vmem %s2, %s38
    %s40 = sadd.s32 0, 0
    %p41 = scmp.lt.s32.totalorder %s40, 0
    %s42 = scalar_select %p41, %s40, 0
    %s43 = smul.addr %s42, 4
    %s44 = scalar_lea.vmem %s1, %s43
    %s45 = sadd.s32 0, 0
    %s46 = sadd.s32 0, 0
    %s47 = smul.u32 8, %s46
    %p48 = scmp.lt.s32.totalorder %s47, 7
    %s49 = scalar_select %p48, %s47, 7
    %s50 = smul.addr %s49, 4
    %s51 = scalar_lea.vmem %s2, %s50
    %s52 = sadd.s32 0, 0
    %s53 = smul.u32 8, %s52
    %p55 = scmp.eq.s32.totalorder 0, 0
    // Predicated region
    $region14: #{tpu_custom_call.1} parent=1 // pred_check
      %p56 = pneg %p55
    $region15: #{tpu_custom_call.1} parent=1 // pred_check_branch
      %58 = sbr.rel (%p56) target = $region17
    $region16: #{tpu_custom_call.1} parent=1 // pred_region
      %vm59 = vcmask 261120
      %60 = vst.msk [vmem:[#allocation2] sm:$0xff] %vm59, 0.0
    $region17: #{tpu_custom_call.1} parent=1 // pred_fallthru
      _
    %v61 = vld [vmem:[%s0] sm:$0xf]
    %v62 = vld [vmem:[%s44] sm:$0xf]
    %v63 = vld [vmem:[%s44 + $0x4] sm:$0xf]
    %v64 = vld [vmem:[%s44 + $0x8] sm:$0xf]
    %v65 = vld [vmem:[%s44 + $0xc] sm:$0xf]
    %v70 = vunpack.c.l.b16 %v62
    %v71 = vunpack.c.l.b16 %v63
    %v72 = vunpack.c.l.b16 %v64
    %v73 = vunpack.c.l.b16 %v65
    %v74 = vpack.c.b16 %v71, %v70
    %v75 = vpack.c.b16 %v73, %v72
    %vm78 = vcmask 261120
    %v80 = vsel %vm78, %v61, 0
    %82 = vmatprep.subr.bf16.mxu0 0
    %83 = vmatpush1.bf16.msra.mxu0 0
    %84 = vmatprep.subr.bf16.mxu0 0
    %85 = vmatpush1.bf16.msra.mxu0 0
    %86 = vmatprep.subr.bf16.mxu0 0
    %87 = vmatpush1.bf16.msra.mxu0 0
    %88 = vmatprep.subr.bf16.mxu0 0
    %89 = vmatpush1.bf16.msra.mxu0 0
    %90 = vmatprep.subr.bf16.mxu0 0
    %91 = vmatpush1.bf16.msra.mxu0 0
    %92 = vmatprep.subr.bf16.mxu0 0
    %93 = vmatpush1.bf16.msra.mxu0 0
    %94 = vmatprep.subr.bf16.mxu0 0
    %95 = vmatpush1.bf16.msra.mxu0 %v75
    %96 = vmatprep.subr.bf16.mxu0 0
    %97 = vmatpush1.bf16.msra.mxu0 %v74
    %98 = vmatprep.subr.bf16.mxu0 0
    %99 = vmatpush2.bf16.msra.mxu0 0
    %100 = vmatprep.subr.bf16.mxu0 0
    %101 = vmatpush2.bf16.msra.mxu0 0
    %102 = vmatprep.subr.bf16.mxu0 0
    %103 = vmatpush2.bf16.msra.mxu0 0
    %104 = vmatprep.subr.bf16.mxu0 0
    %105 = vmatpush2.bf16.msra.mxu0 0
    %106 = vmatprep.subr.bf16.mxu0 0
    %107 = vmatpush2.bf16.msra.mxu0 0
    %108 = vmatprep.subr.bf16.mxu0 0
    %109 = vmatpush2.bf16.msra.mxu0 0
    %110 = vmatprep.subr.bf16.mxu0 0
    %111 = vmatpush2.bf16.msra.mxu0 0
    %112 = vmatprep.subr.bf16.mxu0 0
    %113 = vmatpush2.bf16.msra.mxu0 0
    %114 = vmatprep.mubr.bf16.mxu0 0
    %115 = vmatmul.mubr.bf16.gmra.mxu0 %v80
    %v116 = vpop.f32.mrf.mxu0
    %v117 = vadd.f32 0.0, %v116
    %v118 = vpop.f32.mrf.mxu0
    %v119 = vpop.f32.mrf.mxu0
    %v120 = vpop.f32.mrf.mxu0
    %121 = vdwg.mxu0
    %v122 = vsub.f32 0.0, %v117
    %v123 = vmul.f32 %v122, 1.442695
    %v124 = vpow.pop %v123
    %v125 = vadd.f32 %v124, 1.0
    %v126 = vrcp.pop %v125
    %v127 = vmul.f32 %v117, %v126
    %129 = vrot.lane.b32.xlu0 %v117, 64
    %v130 = vpop.permute.xlu0 %129
    %v132 = vmul.f32 %v127, %v130
    %v133 = vld [vmem:[#allocation2] sm:$0xff]
    %v134 = vpack.c.bf16 %v132, %v132
    %v135 = vld [vmem:[%s51] sm:$0xf]
    %v136 = vld [vmem:[%s51 + $0x4] sm:$0xf]
    %v137 = vld [vmem:[%s51 + $0x8] sm:$0xf]
    %v138 = vld [vmem:[%s51 + $0xc] sm:$0xf]
    %v139 = vld [vmem:[%s51 + $0x10] sm:$0xf]
    %v140 = vld [vmem:[%s51 + $0x14] sm:$0xf]
    %v141 = vld [vmem:[%s51 + $0x18] sm:$0xf]
    %v142 = vld [vmem:[%s51 + $0x1c] sm:$0xf]
    %v151 = vunpack.c.l.b16 %v135
    %v152 = vunpack.c.l.b16 %v136
    %v153 = vunpack.c.l.b16 %v137
    %v154 = vunpack.c.l.b16 %v138
    %v155 = vunpack.c.l.b16 %v139
    %v156 = vunpack.c.l.b16 %v140
    %v157 = vunpack.c.l.b16 %v141
    %v158 = vunpack.c.l.b16 %v142
    %v159 = vpack.c.b16 %v152, %v151
    %v160 = vpack.c.b16 %v154, %v153
    %v161 = vpack.c.b16 %v156, %v155
    %v162 = vpack.c.b16 %v158, %v157
    %vm167 = vcmask 523264
    %v169 = vsel %vm167, %v134, 0
    %171 = vmatprep.subr.bf16.mxu0 0
    %172 = vmatpush1.bf16.msra.mxu0 0
    %173 = vmatprep.subr.bf16.mxu0 0
    %174 = vmatpush1.bf16.msra.mxu0 0
    %175 = vmatprep.subr.bf16.mxu0 0
    %176 = vmatpush1.bf16.msra.mxu0 0
    %177 = vmatprep.subr.bf16.mxu0 0
    %178 = vmatpush1.bf16.msra.mxu0 0
    %179 = vmatprep.subr.bf16.mxu0 0
    %180 = vmatpush1.bf16.msra.mxu0 %v162
    %181 = vmatprep.subr.bf16.mxu0 0
    %182 = vmatpush1.bf16.msra.mxu0 %v161
    %183 = vmatprep.subr.bf16.mxu0 0
    %184 = vmatpush1.bf16.msra.mxu0 %v160
    %185 = vmatprep.subr.bf16.mxu0 0
    %186 = vmatpush1.bf16.msra.mxu0 %v159
    %187 = vmatprep.subr.bf16.mxu0 0
    %188 = vmatpush2.bf16.msra.mxu0 0
    %189 = vmatprep.subr.bf16.mxu0 0
    %190 = vmatpush2.bf16.msra.mxu0 0
    %191 = vmatprep.subr.bf16.mxu0 0
    %192 = vmatpush2.bf16.msra.mxu0 0
    %193 = vmatprep.subr.bf16.mxu0 0
    %194 = vmatpush2.bf16.msra.mxu0 0
    %195 = vmatprep.subr.bf16.mxu0 0
    %196 = vmatpush2.bf16.msra.mxu0 0
    %197 = vmatprep.subr.bf16.mxu0 0
    %198 = vmatpush2.bf16.msra.mxu0 0
    %199 = vmatprep.subr.bf16.mxu0 0
    %200 = vmatpush2.bf16.msra.mxu0 0
    %201 = vmatprep.subr.bf16.mxu0 0
    %202 = vmatpush2.bf16.msra.mxu0 0
    %203 = vmatprep.mubr.bf16.mxu0 0
    %204 = vmatmul.mubr.bf16.gmra.mxu0 %v169
    %v205 = vpop.f32.mrf.mxu0
    %v206 = vadd.f32 0.0, %v205
    %v207 = vpop.f32.mrf.mxu0
    %v208 = vpop.f32.mrf.mxu0
    %v209 = vpop.f32.mrf.mxu0
    %210 = vdwg.mxu0
    %v211 = vadd.f32 %v133, %v206
    %212 = vst.msk [vmem:[#allocation2] sm:$0xff] %vm78, %v211
    // Predicated region
    $region18: #{tpu_custom_call.1} parent=1 // pred_check
      %p213 = pneg %p55
    $region19: #{tpu_custom_call.1} parent=1 // pred_check_branch
      %215 = sbr.rel (%p213) target = $region21
    $region20: #{tpu_custom_call.1} parent=1 // pred_region
      %v216 = vld [vmem:[#allocation2] sm:$0xff]
      %v217 = vpack.c.bf16 %v216, %v216
      %vm218 = vcmask 257024
      %219 = vst.msk [vmem:[#allocation3] sm:$0xf] %vm218, %v217
    $region21: #{tpu_custom_call.1} parent=1 // pred_fallthru
      _
    // Predicated region
    $region22: #{tpu_custom_call.1} parent=1 // pred_check
      _
    $region23: #{tpu_custom_call.1} parent=1 // pred_check_branch
      %221 = sbr.rel (0) target = $region25
    $region24: #{tpu_custom_call.1} parent=1 // pred_region
      %s223 = ssub.s32 64, 64
      %224 = vsyncadd [#allocation4], %s223
      %s226 = sshll.u32 [#allocation3], 4
      %s227 = int_to_ptr.vmem [resolvable:$true] %s226
      %229 = dma.vmem_to_hbm [thread:$0]  %s227, 64, %s3, [#allocation4]
    $region25: #{tpu_custom_call.1} parent=1 // pred_fallthru
      _
    // Predicated region
    $region26: #{tpu_custom_call.1} parent=1 // pred_check
      _
    $region27: #{tpu_custom_call.1} parent=1 // pred_check_branch
      %231 = sbr.rel (0) target = $region29
    $region28: #{tpu_custom_call.1} parent=1 // pred_region
      %232 = dma.done [#allocation4], 64
    $region29: #{tpu_custom_call.1} parent=1 // pred_fallthru
      _
    %233 = vsyncpa [#allocation4], 1

</llo_original>
